<compile_context>
chip_gen: v6e
topology: v6e:2x2x1
jax: 0.10.0
libtpu: 0.0.40
codegen_flags: <defaults>
</compile_context>

<pallas_src>
import functools

import jax
import jax.numpy as jnp
from jax.experimental import pallas as pl
from jax.experimental.pallas import tpu as pltpu

TM_CAP = 2048  # max output rows per grid step (can be raised on v5e/v6e)


def _cdiv(a, b):
    return -(-a // b)


def _round_up(a, b):
    return _cdiv(a, b) * b


# ------------------------------ Pallas kernel ------------------------------ #
def _apply_act(x, act):
    if act == "ReLU":
        return jnp.maximum(x, 0.0)
    if act == "Tanh":
        return jnp.tanh(x)
    if act == "Sigmoid":
        return jax.nn.sigmoid(x)
    if act == "GELU":
        return jax.nn.gelu(x, approximate=False)  # match torch nn.GELU (erf)
    raise ValueError(f"unsupported activation: {act}")


def _tap_gemm_kernel(x_ref, w_ref, b_ref, o_ref, win_ref, *,
                     offs, cin, tm, sub, halo, act):
    """One (tm, Cout) output tile; full reduction over taps * Cin in-kernel.

    x_ref  : (L, Cin)        f32/bf16  padded flat activation (VMEM-resident per image)
    w_ref  : (T*Cin, Cout)   bf16      pre-flipped tap weights, taps stacked along K
    b_ref  : (1, Cout)       f32
    o_ref  : (tm, Cout)      f32/bf16
    win_ref: (tm+halo, Cin)  bf16      window scratch (single cast per grid step)
    """
    base = pl.multiple_of(pl.program_id(1) * tm, 8)
    # One aligned dynamic window load + ONE cast per grid step (not per tap);
    # the per-tap slices below are all static.
    win_ref[...] = x_ref[pl.ds(base, tm + halo), :].astype(jnp.bfloat16)

    cout = w_ref.shape[-1]
    bias = b_ref[...]                                    # (1, Cout) f32

    # Static M sub-tiling: per sub-tile the f32 accumulator fits in the vreg
    # file, so the 9-tap accumulation never round-trips through VMEM.
    for m0 in range(0, tm, sub):
        acc = jnp.zeros((sub, cout), jnp.float32)
        for t, off in enumerate(offs):
            a = win_ref[m0 + off:m0 + off + sub, :]      # bf16 into the MXU
            acc = acc + jnp.dot(a, w_ref[t * cin:(t + 1) * cin, :],
                                preferred_element_type=jnp.float32)
        o_ref[m0:m0 + sub, :] = _apply_act(acc + bias, act).astype(o_ref.dtype)


def tap_gemm(x_flat, wm, bias, offs, m_out, act, out_dtype=jnp.float32):
    """out[g, m, co] = act(sum_t x_flat[g, m + offs[t], ci] * wm[t*Cin+ci, co] + b[co])
    for m in [0, m_out).  Rows of x_flat past its length are treated as zero."""
    G, R, Cin = x_flat.shape
    KW, Cout = wm.shape
    T = len(offs)
    assert KW == T * Cin
    max_off = max(offs)

    # Sub-tile rows so the per-sub-tile f32 accumulator stays register-resident.
    sub_cap = max(8, min(256, (32768 // max(Cout, 128)) // 8 * 8))

    def _tiles(n):
        t0 = _cdiv(m_out, n)
        s = max(8, min(sub_cap, _round_up(t0, 8)))
        return s, _round_up(t0, s)

    n0 = _cdiv(m_out, TM_CAP)
    n_blocks = n0
    sub, tm = _tiles(n0)
    for n in range(n0, n0 + 8):          # prefer m_alloc == m_out (no output slice)
        s, t = _tiles(n)
        if n * t == m_out:
            n_blocks, sub, tm = n, s, t
            break
    m_alloc = n_blocks * tm

    halo = _round_up(max_off, 8) if max_off > 0 else 0
    L = m_alloc + halo
    # Rows >= L are never read: output row m < m_out only touches rows
    # m + off <= m_out - 1 + max_off < L.  Rows in [m_out, m_alloc) produce
    # garbage that is sliced off below (only when m_alloc != m_out).
    if L > R:
        x_flat = jnp.pad(x_flat, ((0, 0), (0, L - R), (0, 0)))
    elif L < R:
        x_flat = x_flat[:, :L, :]

    kernel = functools.partial(
        _tap_gemm_kernel, offs=tuple(int(o) for o in offs), cin=Cin,
        tm=tm, sub=sub, halo=halo, act=act)

    out = pl.pallas_call(
        kernel,
        out_shape=jax.ShapeDtypeStruct((G, m_alloc, Cout), out_dtype),
        grid_spec=pltpu.PrefetchScalarGridSpec(
            num_scalar_prefetch=0,
            grid=(G, n_blocks),
            in_specs=[
                pl.BlockSpec((None, L, Cin), lambda g, m: (g, 0, 0)),   # resident per image
                pl.BlockSpec((KW, Cout), lambda g, m: (0, 0)),
                pl.BlockSpec((1, Cout), lambda g, m: (0, 0)),
            ],
            out_specs=pl.BlockSpec((None, tm, Cout), lambda g, m: (g, m, 0)),
            scratch_shapes=[pltpu.VMEM((tm + halo, Cin), jnp.bfloat16)],
        ),
        compiler_params=pltpu.CompilerParams(
            dimension_semantics=("parallel", "parallel"),
            vmem_limit_bytes=48 * 1024 * 1024,   # generous but <= v7x's 64 MiB
        ),
    )(x_flat, wm, bias)
    if m_alloc != m_out:
        out = out[:, :m_out, :]
    return out


# ------------------------- layer wrappers (NHWC) --------------------------- #
def linear(x, wm, bias, act, out_dtype=jnp.float32):
    """x: (B, K); wm: (K, N) bf16; bias: (1, N) f32."""
    y = tap_gemm(x[None], wm, bias, (0,), x.shape[0], act, out_dtype)
    return y[0]


def conv_transpose2d(x_nhwc, wm, bias, act, stride, padding=0, output_padding=0,
                     out_dtype=jnp.float32):
    """PyTorch-semantics ConvTranspose2d(+bias+act) on NHWC input.

    x_nhwc: (N, H, W, Cin); wm: (k*k*Cin, Cout) bf16 (pre-flipped, taps stacked on K);
    bias: (1, Cout) f32.
    """
    N, H, W, Cin = x_nhwc.shape
    KW, Cout = wm.shape
    T = KW // Cin
    k = int(round(T ** 0.5))
    s, p, op = stride, padding, output_padding

    lo, hi = k - 1 - p, k - 1 - p + op
    # interior padding == stride-s zero dilation; no zeros+scatter.
    xp = jax.lax.pad(x_nhwc, jnp.array(0, x_nhwc.dtype),
                     ((0, 0, 0), (lo, hi, s - 1), (lo, hi, s - 1), (0, 0, 0)))
    _, Hp, Wp, _ = xp.shape
    Ho, Wo = Hp - k + 1, Wp - k + 1

    offs = tuple(ki * Wp + kj for ki in range(k) for kj in range(k))
    x_flat = xp.reshape(N, Hp * Wp, Cin)
    y = tap_gemm(x_flat, wm, bias, offs, Ho * Wp, act, out_dtype)
    # drop wrap-around garbage columns (wo >= Wo)
    return y.reshape(N, Ho, Wp, Cout)[:, :, :Wo, :]


def upsample_nearest_2x(x_nhwc):
    return jnp.repeat(jnp.repeat(x_nhwc, 2, axis=1), 2, axis=2)


# ------------------------------ parameters --------------------------------- #
def _prep_linear(w, b):
    """w: (out, in) torch layout -> (in, out) bf16; b -> (1, out) f32."""
    return w.T.astype(jnp.bfloat16), b.reshape(1, -1).astype(jnp.float32)


def _prep_convt(w, b):
    """w: (Cin, Cout, kH, kW) torch layout -> (kH*kW*Cin, Cout) bf16, flipped."""
    cin, cout, kh, kw = w.shape
    wm = jnp.transpose(jnp.flip(w, axis=(2, 3)), (2, 3, 0, 1)).reshape(kh * kw * cin, cout)
    return wm.astype(jnp.bfloat16), b.reshape(1, cout).astype(jnp.float32)


def _init_linear(key, fin, fout):
    k1, k2 = jax.random.split(key)
    bound = 1.0 / jnp.sqrt(fin)
    w = jax.random.uniform(k1, (fout, fin), jnp.float32, -bound, bound)
    b = jax.random.uniform(k2, (fout,), jnp.float32, -bound, bound)
    return _prep_linear(w, b)


def _init_convt(key, cin, cout, k=3):
    k1, k2 = jax.random.split(key)
    bound = 1.0 / jnp.sqrt(cout * k * k)   # PyTorch fan_in = weight.size(1)*k*k
    w = jax.random.uniform(k1, (cin, cout, k, k), jnp.float32, -bound, bound)
    b = jax.random.uniform(k2, (cout,), jnp.float32, -bound, bound)
    return _prep_convt(w, b)


def init_decoder_params(key):
    ks = jax.random.split(key, 9)
    return {
        "fc":   _init_linear(ks[0], 512, 512),
        "l1c1": _init_convt(ks[1], 512, 512),
        "l1c2": _init_convt(ks[2], 512, 256),
        "l1c3": _init_convt(ks[3], 256, 256),
        "l2c1": _init_convt(ks[4], 256, 128),
        "l2c2": _init_convt(ks[5], 128, 64),
        "l2c3": _init_convt(ks[6], 64, 64),
        "l2c4": _init_convt(ks[7], 64, 32),
        "l2c5": _init_convt(ks[8], 32, 3),
    }


# ------------------------------ forward pass -------------------------------- #
def decoder_forward(params, x, act="ReLU"):
    """x: (B, 512) -> (B, 3, 128, 128) (NCHW, matching PyTorch)."""
    bf = jnp.bfloat16  # hidden activations live in HBM as bf16 (halved traffic)

    h = linear(x, *params["fc"], act, out_dtype=bf)        # (B, 512)
    h = h.reshape(-1, 1, 1, 512)                           # NHWC view of (B,512,1,1)

    # layer1
    h = conv_transpose2d(h, *params["l1c1"], act, stride=2, out_dtype=bf)            # (B,3,3,512)
    h = upsample_nearest_2x(h)                                                       # (B,6,6,512)
    h = conv_transpose2d(h, *params["l1c2"], act, stride=1, out_dtype=bf)            # (B,8,8,256)
    h = conv_transpose2d(h, *params["l1c3"], act, stride=2, padding=1, out_dtype=bf) # (B,15,15,256)
    # nn.Dropout(0.25): identity in eval mode

    # layer2
    h = conv_transpose2d(h, *params["l2c1"], act, stride=2, padding=1, out_dtype=bf) # (B,29,29,128)
    h = upsample_nearest_2x(h)                                                       # (B,58,58,128)
    h = conv_transpose2d(h, *params["l2c2"], act, stride=1, out_dtype=bf)            # (B,60,60,64)
    h = conv_transpose2d(h, *params["l2c3"], act, stride=1, out_dtype=bf)            # (B,62,62,64)
    # nn.Dropout(0.25): identity in eval mode
    h = conv_transpose2d(h, *params["l2c4"], act, stride=2, output_padding=1,
                         out_dtype=bf)                                               # (B,126,126,32)
    h = conv_transpose2d(h, *params["l2c5"], act, stride=1,
                         out_dtype=jnp.float32)                                      # (B,128,128,3)

    return jnp.transpose(h, (0, 3, 1, 2))                  # NCHW


# ------------------------------ references (checks) ------------------------- #
def _reference_linear(x, w, b, act="ReLU"):
    xf = x.astype(jnp.bfloat16).astype(jnp.float32)
    wf = w.astype(jnp.bfloat16).astype(jnp.float32)
    y = xf @ wf.T + b
    return _apply_act(y, act)


def _reference_convt(x_nhwc, w_t, b, act, stride, padding=0, output_padding=0):
    """im2col reference (f32, bf16-rounded inputs to match kernel numerics)."""
    x = x_nhwc.astype(jnp.bfloat16).astype(jnp.float32)
    w = w_t.astype(jnp.bfloat16).astype(jnp.float32)
    s, p, op = stride, padding, output_padding
    N, H, W, Cin = x.shape
    _, Cout, kH, kW = w.shape
    Hd, Wd = (H - 1) * s + 1, (W - 1) * s + 1
    xd = jnp.zeros((N, Hd, Wd, Cin), jnp.float32).at[:, ::s, ::s, :].set(x)
    lo_h, hi_h = kH - 1 - p, kH - 1 - p + op
    lo_w, hi_w = kW - 1 - p, kW - 1 - p + op
    xp = jnp.pad(xd, ((0, 0), (lo_h, hi_h), (lo_w, hi_w), (0, 0)))
    Ho = Hd + lo_h + hi_h - kH + 1
    Wo = Wd + lo_w + hi_w - kW + 1
    patches = jnp.stack(
        [jnp.stack([xp[:, ki:ki + Ho, kj:kj + Wo, :] for kj in range(kW)], axis=3)
         for ki in range(kH)], axis=3)
    a = patches.reshape(N * Ho * Wo, kH * kW * Cin)
    wmat = jnp.transpose(jnp.flip(w, (2, 3)), (2, 3, 0, 1)).reshape(kH * kW * Cin, Cout)
    y = _apply_act(a @ wmat + b, act)
    return y.reshape(N, Ho, Wo, Cout)


# ---------------------------------- main ------------------------------------ #
if __name__ == "__main__":
    key = jax.random.PRNGKey(0)
    k_param, k_x, k1, k2, k3, k4, k5, k6 = jax.random.split(key, 8)

    # sanity check 1: fused linear kernel vs jnp reference
    a = jax.random.normal(k1, (5, 200), jnp.float32)
    wl = jax.random.normal(k2, (48, 200), jnp.float32) * 0.1
    bl = jax.random.normal(k3, (48,), jnp.float32)
    got = linear(a, *_prep_linear(wl, bl), "ReLU")
    ref = _reference_linear(a, wl, bl, "ReLU")
    assert bool(jnp.allclose(got, ref, atol=1e-2, rtol=1e-2)), "linear kernel mismatch"

    # sanity check 2: transposed-conv kernel (stride 2, padding, output_padding)
    xc = jax.random.normal(k4, (2, 6, 5, 16), jnp.float32)
    wc = jax.random.normal(k5, (16, 24, 3, 3), jnp.float32) * 0.1
    bc = jax.random.normal(k6, (24,), jnp.float32)
    got_c = conv_transpose2d(xc, *_prep_convt(wc, bc), "ReLU",
                             stride=2, padding=1, output_padding=1)
    ref_c = _reference_convt(xc, wc, bc, "ReLU", stride=2, padding=1, output_padding=1)
    assert got_c.shape == ref_c.shape, (got_c.shape, ref_c.shape)
    assert bool(jnp.allclose(got_c, ref_c, atol=2e-2, rtol=2e-2)), "convT kernel mismatch"

    # full decoder forward
    params = init_decoder_params(k_param)
    x = jax.random.normal(k_x, (2, 512), jnp.float32)   # batch=2, latent=512

    fwd = jax.jit(functools.partial(decoder_forward, act="ReLU"))
    out = jax.block_until_ready(fwd(params, x))

    assert out.shape == (2, 3, 128, 128), out.shape
    assert bool(jnp.all(jnp.isfinite(out)))
    print("KERNEL_OK")
</pallas_src>

<mosaic_0001>
module attributes {stable_mosaic.version = 11 : i64} {
  func.func @_tap_gemm_kernel(%arg0: i32, %arg1: i32, %arg2: memref<1x8x200xf32, #tpu.memory_space<vmem>>, %arg3: memref<200x48xbf16, #tpu.memory_space<vmem>>, %arg4: memref<1x48xf32, #tpu.memory_space<vmem>>, %arg5: memref<1x8x48xf32, #tpu.memory_space<vmem>>, %arg6: memref<8x200xbf16, #tpu.memory_space<vmem>>) attributes {dimension_semantics = [#tpu.dimension_semantics<parallel>, #tpu.dimension_semantics<parallel>], iteration_bounds = array<i64: 1, 1>, scalar_prefetch = 0 : i64, scratch_operands = 1 : i64, tpu.core_type = #tpu.core_type<tc>, window_params = [{transform_indices = @transform_0, window_bounds = array<i64: 1, 8, 200>}, {pipeline_mode = #tpu.pipeline_mode<synchronous>, transform_indices = @transform_1, window_bounds = array<i64: 200, 48>}, {pipeline_mode = #tpu.pipeline_mode<synchronous>, transform_indices = @transform_2, window_bounds = array<i64: 1, 48>}, {transform_indices = @transform_3, window_bounds = array<i64: 1, 8, 48>}]} {
    %c8_i32 = arith.constant 8 : i32
    %0 = arith.muli %arg1, %c8_i32 : i32
    %1 = tpu.assume_multiple %0, 8 : i32
    %c0 = arith.constant 0 : index
    %2 = arith.index_cast %1 : i32 to index
    %c0_0 = arith.constant 0 : index
    %3 = vector.load %arg2[%c0, %2, %c0_0] : memref<1x8x200xf32, #tpu.memory_space<vmem>>, vector<1x8x200xf32>
    %4 = vector.shape_cast %3 : vector<1x8x200xf32> to vector<8x200xf32>
    %5 = arith.truncf %4 : vector<8x200xf32> to vector<8x200xbf16>
    %c0_1 = arith.constant 0 : index
    %c0_2 = arith.constant 0 : index
    %6 = vector.load %arg6[%c0_1, %c0_2] : memref<8x200xbf16, #tpu.memory_space<vmem>>, vector<8x200xbf16>
    tpu.vector_store %arg6[%c0_1, %c0_2], %5 {strides = array<i32>} : memref<8x200xbf16, #tpu.memory_space<vmem>>, vector<8x200xbf16>,
    %c0_3 = arith.constant 0 : index
    %c0_4 = arith.constant 0 : index
    %7 = vector.load %arg4[%c0_3, %c0_4] : memref<1x48xf32, #tpu.memory_space<vmem>>, vector<1x48xf32>
    %cst = arith.constant 0.000000e+00 : f32
    %8 = vector.broadcast %cst : f32 to vector<8x48xf32>
    %c0_5 = arith.constant 0 : index
    %c0_6 = arith.constant 0 : index
    %9 = vector.load %arg6[%c0_5, %c0_6] : memref<8x200xbf16, #tpu.memory_space<vmem>>, vector<8x200xbf16>
    %c0_7 = arith.constant 0 : index
    %c0_8 = arith.constant 0 : index
    %10 = vector.load %arg3[%c0_7, %c0_8] : memref<200x48xbf16, #tpu.memory_space<vmem>>, vector<200x48xbf16>
    %cst_9 = arith.constant dense<0.000000e+00> : vector<8x48xf32>
    %11 = tpu.matmul %9, %10, %cst_9 {dimension_numbers = #tpu.dot_dimension_numbers<[1], [0], [0], [1], [0, 0, 1, 1], [], []>} : vector<8x200xbf16>, vector<200x48xbf16>, vector<8x48xf32> -> vector<8x48xf32>
    %12 = arith.addf %8, %11 : vector<8x48xf32>
    %13 = vector.broadcast %7 : vector<1x48xf32> to vector<8x48xf32>
    %14 = arith.addf %12, %13 : vector<8x48xf32>
    %cst_10 = arith.constant 0.000000e+00 : f32
    %15 = vector.broadcast %cst_10 : f32 to vector<8x48xf32>
    %16 = arith.maximumf %14, %15 : vector<8x48xf32>
    %c0_11 = arith.constant 0 : index
    %c0_12 = arith.constant 0 : index
    %c0_13 = arith.constant 0 : index
    %17 = vector.load %arg5[%c0_11, %c0_12, %c0_13] : memref<1x8x48xf32, #tpu.memory_space<vmem>>, vector<1x8x48xf32>
    %18 = vector.shape_cast %17 : vector<1x8x48xf32> to vector<8x48xf32>
    %19 = vector.shape_cast %16 : vector<8x48xf32> to vector<1x8x48xf32>
    tpu.vector_store %arg5[%c0_11, %c0_12, %c0_13], %19 {strides = array<i32>} : memref<1x8x48xf32, #tpu.memory_space<vmem>>, vector<1x8x48xf32>,
    return
  }
  func.func @transform_0(%arg0: i32, %arg1: i32) -> (i32, i32, i32) {
    %c0_i32 = arith.constant 0 : i32
    %c0_i32_0 = arith.constant 0 : i32
    %c0_i32_1 = arith.constant 0 : i32
    return %arg0, %c0_i32, %c0_i32_0 : i32, i32, i32
  }
  func.func @transform_1(%arg0: i32, %arg1: i32) -> (i32, i32) {
    %c0_i32 = arith.constant 0 : i32
    %c0_i32_0 = arith.constant 0 : i32
    %c0_i32_1 = arith.constant 0 : i32
    return %c0_i32, %c0_i32_0 : i32, i32
  }
  func.func @transform_2(%arg0: i32, %arg1: i32) -> (i32, i32) {
    %c0_i32 = arith.constant 0 : i32
    %c0_i32_0 = arith.constant 0 : i32
    %c0_i32_1 = arith.constant 0 : i32
    return %c0_i32, %c0_i32_0 : i32, i32
  }
  func.func @transform_3(%arg0: i32, %arg1: i32) -> (i32, i32, i32) {
    %c0_i32 = arith.constant 0 : i32
    %c0_i32_0 = arith.constant 0 : i32
    return %arg0, %arg1, %c0_i32 : i32, i32, i32
  }
}

</mosaic_0001>

<llo_original>
// kernel: tpu_custom_call.1
$region0: #{tpu_custom_call.1}
  #allocation0 [shape = 'u32[]', space=smem, size = 0x4, offset = 0x4, fixed_abs, tag = 'smem constant byte address 0x4 - core index']
  #allocation1 [shape = 'u32[144,128]{1,0:T(1,128)}', space=vmem, size = 0x12000, scoped, tag = 'internal scratch']
  #allocation2 [shape = 'bf16[8,200]{1,0:T(8,128)(2,1)}', space=vmem, size = 0x1000, scoped, tag = 'scratch operand']
  %s0 = inlined_call_operand.vmem [shape: f32[1,8,200], index: 0, kind: input, shape index: {}]
  %s1 = inlined_call_operand.vmem [shape: bf16[200,48], index: 1, kind: input, shape index: {}]
  %s2 = inlined_call_operand.vmem [shape: f32[1,48], index: 2, kind: input, shape index: {}]
  %s3 = inlined_call_operand.hbm [shape: f32[1,8,48], index: 3, kind: output, shape index: {}]
  %s4 = sld [smem:[#allocation0]]
  $region22: #{tpu_custom_call.1} parent=0
    _
  %s6 = ssub.s32 1, %s4
  %s7 = scalar_select 0, %s6, %s4
  $region1: #{tpu_custom_call.1} parent=0
    #allocation3 [shape = 'u8[4096]{0}', space=vmem, size = 0x1000, scoped, tag = 'output window, operand 0, single buffered']
    #allocation4 [shape = 's32[1]{0}', space=sflag, size = 0x4, scoped, tag = 'scoped memory for tpu_custom_call.1']
    %8 = vsyncpa [#allocation4], 0
    // Predicated region
    $region2: #{tpu_custom_call.1} parent=1 // pred_check
      _
    $region3: #{tpu_custom_call.1} parent=1 // pred_check_branch
      %10 = sbr.rel (0) target = $region5
    $region4: #{tpu_custom_call.1} parent=1 // pred_region
      _
    $region5: #{tpu_custom_call.1} parent=1 // pred_fallthru
      _
    // Predicated region
    $region6: #{tpu_custom_call.1} parent=1 // pred_check
      _
    $region7: #{tpu_custom_call.1} parent=1 // pred_check_branch
      %12 = sbr.rel (0) target = $region9
    $region8: #{tpu_custom_call.1} parent=1 // pred_region
      _
    $region9: #{tpu_custom_call.1} parent=1 // pred_fallthru
      _
    // Predicated region
    $region10: #{tpu_custom_call.1} parent=1 // pred_check
      _
    $region11: #{tpu_custom_call.1} parent=1 // pred_check_branch
      %14 = sbr.rel (0) target = $region13
    $region12: #{tpu_custom_call.1} parent=1 // pred_region
      _
    $region13: #{tpu_custom_call.1} parent=1 // pred_fallthru
      _
    %s16 = smul.u32 0, 8
    %s17 = sshra.s32 %s16, 3
    %s18 = sand.u32 %s16, 7
    %s19 = smul.u32 %s17, 2
    %s20 = smul.addr %s19, 8
    %s21 = scalar_lea.vmem %s0, %s20
    %v22 = vld [vmem:[%s21] sm:$0xff]
    %v23 = vld [vmem:[%s21 + $0x8] sm:$0xff]
    %v24 = vpack.c.bf16 %v22, %v22
    %v25 = vpack.c.bf16 %v23, %v23
    %v28 = vunpack.c.l.b16 %v24
    %v29 = vunpack.c.l.b16 %v25
    %v30 = vpack.c.b16 %v29, %v28
    %vm32 = vcmask 1043456
    %vm33 = vcmask 588804
    %vm34 = vmor %vm33, %vm32
    %35 = vst.msk [vmem:[#allocation2] sm:$0xff] %vm34, %v30
    %v36 = vld [vmem:[%s2] sm:$0x1]
    %v37 = vld [vmem:[#allocation2] sm:$0xff]
    %v38 = vld [vmem:[%s1] sm:$0xf]
    %v39 = vld [vmem:[%s1 + $0x4] sm:$0xf]
    %v40 = vld [vmem:[%s1 + $0x8] sm:$0xf]
    %v41 = vld [vmem:[%s1 + $0xc] sm:$0xf]
    %v42 = vld [vmem:[%s1 + $0x10] sm:$0xf]
    %v43 = vld [vmem:[%s1 + $0x14] sm:$0xf]
    %v44 = vld [vmem:[%s1 + $0x18] sm:$0xf]
    %v45 = vld [vmem:[%s1 + $0x1c] sm:$0xf]
    %v46 = vld [vmem:[%s1 + $0x20] sm:$0xf]
    %v47 = vld [vmem:[%s1 + $0x24] sm:$0xf]
    %v48 = vld [vmem:[%s1 + $0x28] sm:$0xf]
    %v49 = vld [vmem:[%s1 + $0x2c] sm:$0xf]
    %v50 = vld [vmem:[%s1 + $0x30] sm:$0xf]
    %v51 = vld [vmem:[%s1 + $0x34] sm:$0xf]
    %v52 = vld [vmem:[%s1 + $0x38] sm:$0xf]
    %v53 = vld [vmem:[%s1 + $0x3c] sm:$0xf]
    %v54 = vld [vmem:[%s1 + $0x40] sm:$0xf]
    %v55 = vld [vmem:[%s1 + $0x44] sm:$0xf]
    %v56 = vld [vmem:[%s1 + $0x48] sm:$0xf]
    %v57 = vld [vmem:[%s1 + $0x4c] sm:$0xf]
    %v58 = vld [vmem:[%s1 + $0x50] sm:$0xf]
    %v59 = vld [vmem:[%s1 + $0x54] sm:$0xf]
    %v60 = vld [vmem:[%s1 + $0x58] sm:$0xf]
    %v61 = vld [vmem:[%s1 + $0x5c] sm:$0xf]
    %v62 = vld [vmem:[%s1 + $0x60] sm:$0xf]
    %v64 = vlaneseq
    %v65 = vshrl.u32 %v64, 7
    %v66 = vsub.s32 0, %v65
    %v67 = vrot.slane %v36, %v66
    %v70 = vunpack.c.l.b16 %v37
    %v71 = vunpack.c.h.b16 %v37
    %v72 = vpack.c.b16 %v70, %v70
    %v73 = vpack.c.b16 %v71, %v71
    %v100 = vunpack.c.l.b16 %v38
    %v101 = vunpack.c.l.b16 %v39
    %v102 = vunpack.c.l.b16 %v40
    %v103 = vunpack.c.l.b16 %v41
    %v104 = vunpack.c.l.b16 %v42
    %v105 = vunpack.c.l.b16 %v43
    %v106 = vunpack.c.l.b16 %v44
    %v107 = vunpack.c.l.b16 %v45
    %v108 = vunpack.c.l.b16 %v46
    %v109 = vunpack.c.l.b16 %v47
    %v110 = vunpack.c.l.b16 %v48
    %v111 = vunpack.c.l.b16 %v49
    %v112 = vunpack.c.l.b16 %v50
    %v113 = vunpack.c.l.b16 %v51
    %v114 = vunpack.c.l.b16 %v52
    %v115 = vunpack.c.l.b16 %v53
    %v116 = vunpack.c.l.b16 %v54
    %v117 = vunpack.c.l.b16 %v55
    %v118 = vunpack.c.l.b16 %v56
    %v119 = vunpack.c.l.b16 %v57
    %v120 = vunpack.c.l.b16 %v58
    %v121 = vunpack.c.l.b16 %v59
    %v122 = vunpack.c.l.b16 %v60
    %v123 = vunpack.c.l.b16 %v61
    %v124 = vunpack.c.l.b16 %v62
    %v125 = vpack.c.b16 %v101, %v100
    %v126 = vpack.c.b16 %v103, %v102
    %v127 = vpack.c.b16 %v105, %v104
    %v128 = vpack.c.b16 %v107, %v106
    %v129 = vpack.c.b16 %v109, %v108
    %v130 = vpack.c.b16 %v111, %v110
    %v131 = vpack.c.b16 %v113, %v112
    %v132 = vpack.c.b16 %v115, %v114
    %v133 = vpack.c.b16 %v117, %v116
    %v134 = vpack.c.b16 %v119, %v118
    %v135 = vpack.c.b16 %v121, %v120
    %v136 = vpack.c.b16 %v123, %v122
    %v137 = vpack.c.b16 %v124, %v124
    %vm150 = vcmask 588800
    %v152 = vsel %vm150, %v73, 0
    %v155 = vsel %vm32, %v137, 0
    %157 = vmatprep.subr.bf16.mxu0 0
    %158 = vmatpush1.bf16.msra.mxu0 %v132
    %159 = vmatprep.subr.bf16.mxu0 0
    %160 = vmatpush1.bf16.msra.mxu0 %v131
    %161 = vmatprep.subr.bf16.mxu0 0
    %162 = vmatpush1.bf16.msra.mxu0 %v130
    %163 = vmatprep.subr.bf16.mxu0 0
    %164 = vmatpush1.bf16.msra.mxu0 %v129
    %165 = vmatprep.subr.bf16.mxu0 0
    %166 = vmatpush1.bf16.msra.mxu0 %v128
    %167 = vmatprep.subr.bf16.mxu0 0
    %168 = vmatpush1.bf16.msra.mxu0 %v127
    %169 = vmatprep.subr.bf16.mxu0 0
    %170 = vmatpush1.bf16.msra.mxu0 %v126
    %171 = vmatprep.subr.bf16.mxu0 0
    %172 = vmatpush1.bf16.msra.mxu0 %v125
    %173 = vmatprep.subr.bf16.mxu0 0
    %174 = vmatpush2.bf16.msra.mxu0 0
    %175 = vmatprep.subr.bf16.mxu0 0
    %176 = vmatpush2.bf16.msra.mxu0 0
    %177 = vmatprep.subr.bf16.mxu0 0
    %178 = vmatpush2.bf16.msra.mxu0 0
    %179 = vmatprep.subr.bf16.mxu0 0
    %180 = vmatpush2.bf16.msra.mxu0 %v155
    %181 = vmatprep.subr.bf16.mxu0 0
    %182 = vmatpush2.bf16.msra.mxu0 %v136
    %183 = vmatprep.subr.bf16.mxu0 0
    %184 = vmatpush2.bf16.msra.mxu0 %v135
    %185 = vmatprep.subr.bf16.mxu0 0
    %186 = vmatpush2.bf16.msra.mxu0 %v134
    %187 = vmatprep.subr.bf16.mxu0 0
    %188 = vmatpush2.bf16.msra.mxu0 %v133
    %189 = vmatprep.mubr.bf16.mxu0 %v152
    %190 = vmatmul.mubr.bf16.gmra.mxu0 %v72
    %v191 = vpop.f32.mrf.mxu0
    %v192 = vadd.f32 %v67, %v191
    %v193 = vpop.f32.mrf.mxu0
    %v194 = vpop.f32.mrf.mxu0
    %v195 = vpop.f32.mrf.mxu0
    %196 = vdwg.mxu0
    %v197 = vmax.f32 %v192, 0.0
    %vm198 = vcmask 392192
    %199 = vst.msk [vmem:[#allocation3] sm:$0xff] %vm198, %v197
    // Predicated region
    $region14: #{tpu_custom_call.1} parent=1 // pred_check
      _
    $region15: #{tpu_custom_call.1} parent=1 // pred_check_branch
      %201 = sbr.rel (0) target = $region17
    $region16: #{tpu_custom_call.1} parent=1 // pred_region
      %s203 = ssub.s32 128, 128
      %204 = vsyncadd [#allocation4], %s203
      %s206 = sshll.u32 [#allocation3], 4
      %s207 = int_to_ptr.vmem [resolvable:$true] %s206
      %209 = dma.vmem_to_hbm [thread:$0]  %s207, 128, %s3, [#allocation4]
    $region17: #{tpu_custom_call.1} parent=1 // pred_fallthru
      _
    // Predicated region
    $region18: #{tpu_custom_call.1} parent=1 // pred_check
      _
    $region19: #{tpu_custom_call.1} parent=1 // pred_check_branch
      %211 = sbr.rel (0) target = $region21
    $region20: #{tpu_custom_call.1} parent=1 // pred_region
      %212 = dma.done [#allocation4], 128
    $region21: #{tpu_custom_call.1} parent=1 // pred_fallthru
      _
    %213 = vsyncpa [#allocation4], 1

</llo_original>
